<compile_context>
chip_gen: v6e
topology: v6e:2x2x1
jax: 0.10.0
libtpu: 0.0.40
codegen_flags: <defaults>
</compile_context>

<pallas_src>
import functools

import jax
import jax.numpy as jnp
from jax import lax
from jax.experimental import pallas as pl
from jax.experimental.pallas import tpu as pltpu


# --------------------------------------------------------------------------------------
# Kernels
# --------------------------------------------------------------------------------------
def _pe_kernel(t_ref, invf_ref, out_ref):
    """Standard path (out_width >= 128 or fold not applicable).

    t_ref:    (TM, 1)       float32 timesteps
    invf_ref: (1, half_dim) float32 inverse frequencies (broadcast to every block)
    out_ref:  (TM, 2*half)  [sin | cos]
    """
    half = invf_ref.shape[-1]
    freqs = t_ref[...] * invf_ref[...]          # (TM,1)*(1,half) -> (TM,half)
    sin = jnp.sin(freqs)
    cos = jnp.cos(freqs)
    if half % 128 == 0:
        # Both halves are 128-lane aligned -> two unmasked stores, no concat relayout.
        out_ref[:, :half] = sin.astype(out_ref.dtype)
        out_ref[:, half:] = cos.astype(out_ref.dtype)
    else:
        # Rare fallback (out_width < 128 that couldn't be folded, or odd widths).
        out_ref[...] = jnp.concatenate([sin, cos], axis=-1).astype(out_ref.dtype)


def _pe_kernel_folded(t_ref, invf_ref, out_ref):
    """Folded path for small embeddings: g consecutive timesteps per 128-lane output row.

    t_ref:    (TM, g)            float32 timesteps (g = 128 // out_width)
    invf_ref: (1, g*out_width)   per-lane scale, layout [invf|invf] repeated per group
    out_ref:  (TM, g*out_width)  g*out_width == 128 -> unmasked full-lane stores
    """
    tm, g = t_ref.shape
    w = out_ref.shape[-1]
    out_width = w // g
    half = out_width // 2

    # Repeat each timestep across its out_width lanes (broadcast + collapse of minor dims).
    t_rep = jnp.broadcast_to(t_ref[...][:, :, None], (tm, g, out_width)).reshape(tm, w)
    phase = t_rep * invf_ref[...]               # (TM, 128), pure VPU

    sin = jnp.sin(phase)
    cos = jnp.cos(phase)
    lane = lax.broadcasted_iota(jnp.int32, (tm, w), 1)
    is_sin = (lane % out_width) < half          # first half of every group is sin
    out_ref[...] = jnp.where(is_sin, sin, cos).astype(out_ref.dtype)


# --------------------------------------------------------------------------------------
# Tiling helpers
# --------------------------------------------------------------------------------------
def _vmem_limit_bytes() -> int:
    """Generation-aware scoped-VMEM budget: ~half of physical, capped at 64 MiB."""
    try:
        cap = int(pltpu.get_tpu_info().vmem_capacity_bytes)
    except Exception:
        cap = 64 << 20                                   # conservative (v7x-sized) default
    return int(min(64 << 20, max(16 << 20, cap // 2)))


def _choose_row_tile(n_rows: int, out_row_bytes: int, in_row_bytes: int,
                     vmem_budget: int) -> int:
    """Row tile: ~4 MiB output block, double-buffered working set within ~half the VMEM
    budget, multiple of 8, and (when worthwhile) an even number of grid steps for v7x."""
    target_out = 4 << 20
    ws_budget = vmem_budget // 2                          # headroom for Mosaic internals
    per_row = 2 * (out_row_bytes + in_row_bytes)          # double-buffered in + out
    tm = min(target_out // max(out_row_bytes, 1), ws_budget // max(per_row, 1))
    tm = max(8, (tm // 8) * 8)

    if tm >= n_rows:
        if n_rows >= 16:
            # Split into two blocks so both v7x TensorCores are busy.
            return pl.cdiv(pl.cdiv(n_rows, 2), 8) * 8
        return n_rows                                     # tiny: one full-extent block

    nblk = pl.cdiv(n_rows, tm)
    if nblk % 2 == 1:                                     # prefer an even step count
        tm_even = max(8, ((pl.cdiv(n_rows, nblk + 1) + 7) // 8) * 8)
        if pl.cdiv(n_rows, tm_even) % 2 == 0:
            tm = tm_even
    return tm


# --------------------------------------------------------------------------------------
# Wrapper
# --------------------------------------------------------------------------------------
@functools.partial(jax.jit, static_argnames=("embedding_dim", "out_dtype"))
def sinusoidal_positional_encoding(timesteps: jax.Array, embedding_dim: int,
                                   out_dtype=jnp.float32) -> jax.Array:
    """Pallas TPU implementation of SinusoidalPositionalEncoding.forward.

    timesteps: (B, T) any real dtype (cast to float32, mirroring `.float()`).
    returns:   (B, T, 2 * (embedding_dim // 2)) in `out_dtype` (float32 by default,
               matching the PyTorch cat([sin, cos]) exactly).
    """
    timesteps = timesteps.astype(jnp.float32)
    B, T = timesteps.shape
    M = B * T
    half = embedding_dim // 2
    out_width = 2 * half
    out_dt = jnp.dtype(out_dtype)
    out_bytes = out_dt.itemsize

    inv_freqs = jnp.exp(
        -jnp.arange(half, dtype=jnp.float32) * (jnp.log(10000.0) / half))

    vmem_budget = _vmem_limit_bytes()
    params = pltpu.CompilerParams(dimension_semantics=("parallel",),
                                  vmem_limit_bytes=vmem_budget)

    # A (TM, k<128) f32 input block is lane-padded to 128 in VMEM -> 512 B per row.
    T_ROW_PADDED_BYTES = 128 * 4

    fold = 128 // out_width if (0 < out_width < 128 and 128 % out_width == 0) else 1
    if fold > 1 and M % fold == 0:
        # ---- Folded small-embedding path: lane-dense 128-wide output rows. ----
        g = fold
        Mr = M // g
        W = g * out_width                                 # == 128
        t_in = timesteps.reshape(Mr, g)
        invf_in = jnp.tile(jnp.concatenate([inv_freqs, inv_freqs]), g).reshape(1, W)

        TM = _choose_row_tile(Mr, W * out_bytes, T_ROW_PADDED_BYTES, vmem_budget)
        grid = (pl.cdiv(Mr, TM),)
        cost = pl.CostEstimate(
            flops=2 * Mr * W,
            transcendentals=2 * Mr * W,
            bytes_accessed=4 * M + 4 * W + out_bytes * Mr * W)

        out = pl.pallas_call(
            _pe_kernel_folded,
            out_shape=jax.ShapeDtypeStruct((Mr, W), out_dt),
            grid=grid,
            in_specs=[pl.BlockSpec((TM, g), lambda i: (i, 0)),
                      pl.BlockSpec((1, W), lambda i: (0, 0))],
            out_specs=pl.BlockSpec((TM, W), lambda i: (i, 0)),
            compiler_params=params,
            cost_estimate=cost,
        )(t_in, invf_in)
        return out.reshape(B, T, out_width)

    # ---- Standard path: one timestep per output row. ----
    t_in = timesteps.reshape(M, 1)
    invf_in = inv_freqs.reshape(1, half)
    TM = _choose_row_tile(M, out_width * out_bytes, T_ROW_PADDED_BYTES, vmem_budget)
    grid = (pl.cdiv(M, TM),)
    cost = pl.CostEstimate(
        flops=M * half,
        transcendentals=M * out_width,
        bytes_accessed=4 * M + 4 * half + out_bytes * M * out_width)

    out = pl.pallas_call(
        _pe_kernel,
        out_shape=jax.ShapeDtypeStruct((M, out_width), out_dt),
        grid=grid,
        in_specs=[pl.BlockSpec((TM, 1), lambda i: (i, 0)),
                  pl.BlockSpec((1, half), lambda i: (0, 0))],
        out_specs=pl.BlockSpec((TM, out_width), lambda i: (i, 0)),
        compiler_params=params,
        cost_estimate=cost,
    )(t_in, invf_in)
    return out.reshape(B, T, out_width)


# --------------------------------------------------------------------------------------
# Reference + tests
# --------------------------------------------------------------------------------------
def _reference(timesteps: jax.Array, embedding_dim: int) -> jax.Array:
    """Pure-JAX reference mirroring the PyTorch module."""
    t = timesteps.astype(jnp.float32)
    half = embedding_dim // 2
    exponent = -jnp.arange(half, dtype=jnp.float32) * (jnp.log(10000.0) / half)
    freqs = t[..., None] * jnp.exp(exponent)
    return jnp.concatenate([jnp.sin(freqs), jnp.cos(freqs)], axis=-1)


if __name__ == "__main__":
    # SinusoidalPositionalEncoding has no learnable parameters; only embedding_dim matters.
    key = jax.random.PRNGKey(0)

    # 1) Small case (diffusion-style timesteps); exercises the folded path, single block.
    B, T, EMBED = 2, 8, 32
    ts = jax.random.uniform(key, (B, T), minval=0.0, maxval=1000.0, dtype=jnp.float32)
    enc = jax.block_until_ready(sinusoidal_positional_encoding(ts, EMBED))
    ref = _reference(ts, EMBED)
    assert enc.shape == (B, T, EMBED), enc.shape
    assert enc.dtype == jnp.float32
    assert jnp.allclose(enc, ref, atol=1e-5, rtol=1e-5)

    # 2) Non-folded case: half_dim multiple of 128, even 2-step parallel grid, partial block.
    B2, T2, EMBED2 = 4, 300, 256
    ts2 = jax.random.uniform(jax.random.PRNGKey(1), (B2, T2), minval=0.0, maxval=1000.0,
                             dtype=jnp.float32)
    enc2 = jax.block_until_ready(sinusoidal_positional_encoding(ts2, EMBED2))
    ref2 = _reference(ts2, EMBED2)
    assert enc2.shape == (B2, T2, EMBED2)
    assert jnp.allclose(enc2, ref2, atol=1e-5, rtol=1e-5)

    # 3) Folded small-embedding case with an even multi-step grid.
    B3, T3, EMBED3 = 8, 96, 64
    ts3 = jax.random.uniform(jax.random.PRNGKey(2), (B3, T3), minval=0.0, maxval=1000.0,
                             dtype=jnp.float32)
    enc3 = jax.block_until_ready(sinusoidal_positional_encoding(ts3, EMBED3))
    ref3 = _reference(ts3, EMBED3)
    assert enc3.shape == (B3, T3, EMBED3)
    assert jnp.allclose(enc3, ref3, atol=1e-5, rtol=1e-5)

    print("KERNEL_OK")
</pallas_src>

<mosaic_0001>
module attributes {stable_mosaic.version = 11 : i64} {
  func.func @_pe_kernel_folded(%arg0: i32, %arg1: memref<4x4xf32, #tpu.memory_space<vmem>>, %arg2: memref<1x128xf32, #tpu.memory_space<vmem>>, %arg3: memref<4x128xf32, #tpu.memory_space<vmem>>) attributes {dimension_semantics = [#tpu.dimension_semantics<parallel>], iteration_bounds = array<i64: 1>, scalar_prefetch = 0 : i64, scratch_operands = 0 : i64, tpu.core_type = #tpu.core_type<tc>, window_params = [{transform_indices = @transform_0, window_bounds = array<i64: 4, 4>}, {pipeline_mode = #tpu.pipeline_mode<synchronous>, transform_indices = @transform_1, window_bounds = array<i64: 1, 128>}, {transform_indices = @transform_2, window_bounds = array<i64: 4, 128>}]} {
    %c0 = arith.constant 0 : index
    %c0_0 = arith.constant 0 : index
    %0 = vector.load %arg1[%c0, %c0_0] : memref<4x4xf32, #tpu.memory_space<vmem>>, vector<4x4xf32>
    %1 = vector.shape_cast %0 : vector<4x4xf32> to vector<4x4x1xf32>
    %2 = vector.shape_cast %1 : vector<4x4x1xf32> to vector<4x4x1xf32>
    %3 = vector.broadcast %2 : vector<4x4x1xf32> to vector<4x4x32xf32>
    %4 = vector.shape_cast %3 : vector<4x4x32xf32> to vector<4x128xf32>
    %c0_1 = arith.constant 0 : index
    %c0_2 = arith.constant 0 : index
    %5 = vector.load %arg2[%c0_1, %c0_2] : memref<1x128xf32, #tpu.memory_space<vmem>>, vector<1x128xf32>
    %6 = vector.broadcast %5 : vector<1x128xf32> to vector<4x128xf32>
    %7 = arith.mulf %4, %6 : vector<4x128xf32>
    %8 = math.sin %7 : vector<4x128xf32>
    %9 = math.cos %7 : vector<4x128xf32>
    %10 = tpu.iota {dimensions = array<i32: 1>} : vector<4x128xi32>
    %c32_i32 = arith.constant 32 : i32
    %c0_i32 = arith.constant 0 : i32
    %11 = arith.cmpi eq, %c32_i32, %c0_i32 : i32
    %c1_i32 = arith.constant 1 : i32
    %12 = arith.select %11, %c1_i32, %c32_i32 : i32
    %13 = vector.broadcast %12 : i32 to vector<4x128xi32>
    %14 = arith.remsi %10, %13 : vector<4x128xi32>
    %c0_i32_3 = arith.constant 0 : i32
    %15 = vector.broadcast %c0_i32_3 : i32 to vector<4x128xi32>
    %16 = arith.cmpi ne, %14, %15 : vector<4x128xi32>
    %c0_i32_4 = arith.constant 0 : i32
    %17 = vector.broadcast %c0_i32_4 : i32 to vector<4x128xi32>
    %18 = arith.cmpi slt, %14, %17 : vector<4x128xi32>
    %c0_i32_5 = arith.constant 0 : i32
    %19 = arith.cmpi slt, %12, %c0_i32_5 : i32
    %20 = vector.broadcast %19 : i1 to vector<4x128xi1>
    %21 = vector.broadcast %20 : vector<4x128xi1> to vector<4x128xi1>
    %22 = arith.xori %18, %21 : vector<4x128xi1>
    %23 = arith.andi %22, %16 : vector<4x128xi1>
    %24 = vector.broadcast %12 : i32 to vector<4x128xi32>
    %25 = arith.addi %14, %24 : vector<4x128xi32>
    %26 = arith.select %23, %25, %14 : vector<4x128xi1>, vector<4x128xi32>
    %c16_i32 = arith.constant 16 : i32
    %27 = vector.broadcast %c16_i32 : i32 to vector<4x128xi32>
    %28 = arith.cmpi slt, %26, %27 : vector<4x128xi32>
    %29 = arith.select %28, %8, %9 : vector<4x128xi1>, vector<4x128xf32>
    %c0_6 = arith.constant 0 : index
    %c0_7 = arith.constant 0 : index
    %30 = vector.load %arg3[%c0_6, %c0_7] : memref<4x128xf32, #tpu.memory_space<vmem>>, vector<4x128xf32>
    tpu.vector_store %arg3[%c0_6, %c0_7], %29 {strides = array<i32>} : memref<4x128xf32, #tpu.memory_space<vmem>>, vector<4x128xf32>,
    return
  }
  func.func @transform_0(%arg0: i32) -> (i32, i32) {
    %c0_i32 = arith.constant 0 : i32
    %c0_i32_0 = arith.constant 0 : i32
    return %arg0, %c0_i32 : i32, i32
  }
  func.func @transform_1(%arg0: i32) -> (i32, i32) {
    %c0_i32 = arith.constant 0 : i32
    %c0_i32_0 = arith.constant 0 : i32
    %c0_i32_1 = arith.constant 0 : i32
    return %c0_i32, %c0_i32_0 : i32, i32
  }
  func.func @transform_2(%arg0: i32) -> (i32, i32) {
    %c0_i32 = arith.constant 0 : i32
    %c0_i32_0 = arith.constant 0 : i32
    return %arg0, %c0_i32 : i32, i32
  }
}

</mosaic_0001>

<llo_original>
// kernel: tile.8
$region0: #{tile.8}
  #allocation0 [shape = 's32[1]{0}', space=sflag, size = 0x4, scoped, tag = 'scoped memory for tile.8']
  %s0 = inlined_call_operand.vmem [shape: f32[32], index: 0, kind: input, shape index: {}]
  %s1 = inlined_call_operand.vmem [shape: f32[4,32], index: 1, kind: output, shape index: {}]
  // Predicated region
  $region2: #{tile.8} parent=0 // pred_check
    _
  $region3: #{tile.8} parent=0 // pred_check_branch
    %3 = sbr.rel (0) target = $region5
  $region4: #{tile.8} parent=0 // pred_region
    _
  $region5: #{tile.8} parent=0 // pred_fallthru
    _
  %v4 = vld [vmem:[%s0] ss:$0 sm:$0xff]
  %5 = vst [vmem:[%s1] sm:$0xf] %v4

// kernel: tile.9
$region0: #{tile.9}
  %s0 = inlined_call_operand.vmem [shape: f32[4,32], index: 0, kind: input, shape index: {}]
  %s1 = inlined_call_operand.vmem [shape: f32[1,128], index: 1, kind: output, shape index: {}]
  $region1: #{tile.9} parent=0
    #allocation0 [shape = 'u8[4096]{0}', space=vmem, size = 0x1000, scoped, tag = 'scoped mem for output reshape']
    #allocation1 [shape = 'u8[4096]{0}', space=vmem, size = 0x1000, scoped, tag = 'scoped mem for input reshape']
    %s3 = sshll.u32 1, 4
    %s4 = ssub.s32 %s3, 1
    %v5 = vld [vmem:[%s0] sm:%s4]
    %6 = vst [vmem:[#allocation1] sm:%s4] %v5
    %v7 = vld [vmem:[#allocation1] sm:$0x1]
    %vm8 = vcmask 261120
    %9 = vst.msk [vmem:[#allocation0] sm:$0x1] %vm8, %v7
    %s10 = scalar_lea.vmem [#allocation1], 3
    %v11 = vld [vmem:[%s10] sm:$0x1]
    %12 = vrot.lane.b32.xlu0 %v11, 96
    %v13 = vpop.permute.xlu0 %12
    %vm14 = vcmask 1048320
    %15 = vst.msk [vmem:[#allocation0] sm:$0x1] %vm14, %v13
    %s16 = scalar_lea.vmem [#allocation1], 2
    %v17 = vld [vmem:[%s16] sm:$0x1]
    %18 = vrot.lane.b32.xlu0 %v17, 64
    %v19 = vpop.permute.xlu0 %18
    %vm20 = vcmask 785920
    %21 = vst.msk [vmem:[#allocation0] sm:$0x1] %vm20, %v19
    %s22 = scalar_lea.vmem [#allocation1], 1
    %v23 = vld [vmem:[%s22] sm:$0x1]
    %24 = vrot.lane.b32.xlu0 %v23, 32
    %v25 = vpop.permute.xlu0 %24
    %vm26 = vcmask 523520
    %27 = vst.msk [vmem:[#allocation0] sm:$0x1] %vm26, %v25
    %s29 = sshll.u32 1, 1
    %s30 = ssub.s32 %s29, 1
    %v32 = vld [vmem:[#allocation0] sm:%s30]
    %s33 = sshll.u32 1, 1
    %s34 = ssub.s32 %s33, 1
    %35 = vst [vmem:[%s1] sm:%s34] %v32

// kernel: sinusoidal_positional_encoding.1
$region0: #{sinusoidal_positional_encoding.1}
  #allocation0 [shape = 'u32[]', space=smem, size = 0x4, offset = 0x4, fixed_abs, tag = 'smem constant byte address 0x4 - core index']
  #allocation1 [shape = 'u32[144,128]{1,0:T(1,128)}', space=vmem, size = 0x12000, scoped, tag = 'internal scratch']
  %s0 = inlined_call_operand.vmem [shape: f32[4,4], index: 0, kind: input, shape index: {}]
  %s1 = inlined_call_operand.vmem [shape: f32[1,128], index: 1, kind: input, shape index: {}]
  %s2 = inlined_call_operand.vmem [shape: f32[4,128], index: 2, kind: output, shape index: {}]
  %s3 = sld [smem:[#allocation0]]
  $region18: #{sinusoidal_positional_encoding.1} parent=0
    _
  %s5 = ssub.s32 1, %s3
  %s6 = scalar_select 0, %s5, %s3
  // Predicated region
  $region2: #{sinusoidal_positional_encoding.1} parent=0 // pred_check
    _
  $region3: #{sinusoidal_positional_encoding.1} parent=0 // pred_check_branch
    %8 = sbr.rel (0) target = $region5
  $region4: #{sinusoidal_positional_encoding.1} parent=0 // pred_region
    _
  $region5: #{sinusoidal_positional_encoding.1} parent=0 // pred_fallthru
    _
  // Predicated region
  $region6: #{sinusoidal_positional_encoding.1} parent=0 // pred_check
    _
  $region7: #{sinusoidal_positional_encoding.1} parent=0 // pred_check_branch
    %10 = sbr.rel (0) target = $region9
  $region8: #{sinusoidal_positional_encoding.1} parent=0 // pred_region
    _
  $region9: #{sinusoidal_positional_encoding.1} parent=0 // pred_fallthru
    _
  %v11 = vld [vmem:[%s0] sm:$0xf]
  %v12 = vlaneseq
  %v13 = vshrl.u32 %v12, 7
  %v14 = vsub.s32 0, %v13
  %v15 = vrot.slane %v11, %v14
  %17 = vbcast.lane.b32.xlu0 %v15, 256
  %v18 = vpop.permute.xlu0 %17
  %v19 = vlaneseq
  %v20 = vshrl.u32 %v19, 7
  %v21 = vsub.s32 1, %v20
  %v22 = vrot.slane %v11, %v21
  %24 = vbcast.lane.b32.xlu0 %v22, 256
  %v25 = vpop.permute.xlu0 %24
  %v26 = vlaneseq
  %v27 = vshrl.u32 %v26, 7
  %v28 = vsub.s32 2, %v27
  %v29 = vrot.slane %v11, %v28
  %31 = vbcast.lane.b32.xlu0 %v29, 256
  %v32 = vpop.permute.xlu0 %31
  %v33 = vlaneseq
  %v34 = vshrl.u32 %v33, 7
  %v35 = vsub.s32 3, %v34
  %v36 = vrot.slane %v11, %v35
  %38 = vbcast.lane.b32.xlu0 %v36, 256
  %v39 = vpop.permute.xlu0 %38
  %v40 = vcombine.low %v18, %v32
  %v42 = vunpack.c.l.s4 1983009808
  %v43 = vunpack.c.0.s8 %v42
  %v44 = vlaneseq
  %v45 = vshrl.u32 %v44, 7
  %v46 = vsub.s32 %v43, %v45
  %v47 = vrot.slane %v40, %v46
  %v48 = vcombine.low %v25, %v39
  %v50 = vunpack.c.l.s4 1983009808
  %v51 = vunpack.c.0.s8 %v50
  %v52 = vlaneseq
  %v53 = vshrl.u32 %v52, 7
  %v54 = vsub.s32 %v51, %v53
  %v55 = vrot.slane %v48, %v54
  %v56 = vcombine.low %v47, %v55
  %v57 = vcombine.high %v47, %v55
  %v59 = vunpack.c.l.s4 1934713408
  %v60 = vunpack.c.0.s8 %v59
  %v61 = vlaneseq
  %v62 = vshrl.u32 %v61, 7
  %v63 = vsub.s32 %v60, %v62
  %v64 = vrot.slane %v56, %v63
  %v66 = vunpack.c.l.s4 1934713408
  %v67 = vunpack.c.0.s8 %v66
  %v68 = vlaneseq
  %v69 = vshrl.u32 %v68, 7
  %v70 = vsub.s32 %v67, %v69
  %v71 = vrot.slane %v57, %v70
  %v72 = vcombine.high %v64, 0.0
  %v73 = vcombine.high %v71, 0.0
  %75 = vrot.lane.b32.xlu0 %v72, 32
  %v76 = vpop.permute.xlu0 %75
  %79 = vrot.lane.b32.xlu0 %v71, 64
  %v80 = vpop.permute.xlu0 %79
  %83 = vrot.lane.b32.xlu0 %v73, 96
  %v84 = vpop.permute.xlu0 %83
  %vm86 = vcmask 261120
  %v87 = vsel %vm86, %v64, %v76
  %vm88 = vcmask 523264
  %v89 = vsel %vm88, %v87, %v80
  %vm90 = vcmask 785408
  %v91 = vsel %vm90, %v89, %v84
  %v92 = vld [vmem:[%s1] sm:$0x1]
  %v94 = vlaneseq
  %v95 = vshrl.u32 %v94, 7
  %v96 = vsub.s32 0, %v95
  %v97 = vrot.slane %v92, %v96
  %v99 = vmul.f32 %v91, %v97
  %v100 = vand.u32 2147483647, %v99
  %vm101 = vcmp.le.f32.partialorder %v100, 0.7853982
  %vm102 = vcmp.lt.s32.totalorder %v99, 0
  %v103 = vand.u32 %v99, 2139095040
  %v104 = vshrl.u32 %v103, 23
  %v105 = vsub.s32 %v104, 127
  %v106 = vand.u32 2147483647, %v99
  %v107 = vand.u32 %v106, 8388607
  %v108 = vor.u32 %v107, 8388608
  %v109 = vsub.s32 0, %v108
  %v110 = vadd.s32 %v105, 1
  %vm111 = vcmp.gt.s32.totalorder %v110, 0
  %v112 = vsel %vm111, %v110, 0
  %v113 = vshrl.u32 %v112, 5
  %v114 = vand.u32 %v112, 31
  %v115 = vsub.s32 32, %v114
  %v116 = vshrl.u32 683565275, %v115
  %v117 = vshll.u32 683565275, %v114
  %v118 = vshrl.u32 2475754826, %v115
  %v119 = vor.u32 %v117, %v118
  %v120 = vshll.u32 2475754826, %v114
  %v121 = vshrl.u32 2131351028, %v115
  %v122 = vor.u32 %v120, %v121
  %v123 = vshll.u32 2131351028, %v114
  %v124 = vshrl.u32 2102212464, %v115
  %v125 = vor.u32 %v123, %v124
  %v126 = vshll.u32 2102212464, %v114
  %v127 = vshrl.u32 920167782, %v115
  %v128 = vor.u32 %v126, %v127
  %v129 = vshll.u32 920167782, %v114
  %v130 = vshrl.u32 1326507024, %v115
  %v131 = vor.u32 %v129, %v130
  %vm132 = vcmp.lt.s32.totalorder %v113, 1
  %vm133 = vcmp.lt.s32.totalorder %v113, 2
  %vm134 = vcmp.lt.s32.totalorder %v113, 3
  %vm135 = vcmp.lt.s32.totalorder %v113, 4
  %v136 = vsel %vm132, %v116, %v119
  %v137 = vsel %vm135, %v125, 2102212464
  %v138 = vsel %vm134, %v122, %v137
  %v139 = vsel %vm133, %v136, %v138
  %v140 = vsel %vm132, %v119, %v122
  %v141 = vsel %vm135, %v128, 920167782
  %v142 = vsel %vm134, %v125, %v141
  %v143 = vsel %vm133, %v140, %v142
  %v144 = vsel %vm132, %v122, %v125
  %v145 = vsel %vm135, %v131, 1326507024
  %v146 = vsel %vm134, %v128, %v145
  %v147 = vsel %vm133, %v144, %v146
  %v148 = vshll.u32 %v108, 8
  %v149 = vmul.u32.u64.compose %v148, %v147
  %v150 = vextract.low.u32 %v149
  %v151 = vextract.high.u32 %v149
  %v152 = vmul.u32.u64.compose %v148, %v143
  %v153 = vextract.low.u32 %v152
  %v154 = vextract.high.u32 %v152
  %v155 = vmul.u32 %v148, %v139
  %v156 = vadd.s32 %v151, %v153
  %vm157 = vc.u32 %v151, %v153
  %v158 = vadd.s32 %v154, 1
  %v159 = vsel %vm157, %v158, %v154
  %v160 = vadd.s32 %v155, %v159
  %v161 = vadd.s32 %v160, 536870912
  %v162 = vshrl.u32 %v161, 30
  %v163 = vshll.u32 %v162, 30
  %v164 = vsub.s32 %v160, %v163
  %vm165 = vcmp.lt.s32.totalorder %v164, 0
  %v166 = vsub.s32 0, %v164
  %v167 = vsel %vm165, %v166, %v164
  %v168 = vclz %v167
  %v169 = vsub.s32 %v168, 2
  %vm170 = vcmp.gt.s32.totalorder 0, %v169
  %v171 = vsel %vm170, 0, %v169
  %v172 = vsub.s32 32, %v171
  %v173 = vshll.u32 %v164, %v171
  %v174 = vshrl.u32 %v156, %v172
  %v175 = vor.u32 %v173, %v174
  %v176 = vsub.s32 4294967266, %v171
  %v177 = vadd.s32 %v176, 127
  %v178 = vshll.u32 %v177, 23
  %v179 = vor.u32 4788187, %v178
  %v180 = vand.u32 2147483647, %v179
  %v182 = vcvt.s32.f32 %v175
  %v183 = vmul.f32 %v182, %v180
  %v184 = vxor.u32 %v183, 2147483648
  %v185 = vsel %vm102, %v184, %v183
  %v186 = vsub.s32 4, %v162
  %v187 = vsel %vm102, %v186, %v162
  %v188 = vsel %vm101, %v99, %v185
  %v189 = vsel %vm101, 0, %v187
  %v190 = vcosq.f32.pop %v188
  %v191 = vsinq.f32.pop %v188
  %vm192 = vweird.f32 %v99
  %v193 = vadd.s32 %v189, 3
  %v194 = vand.u32 %v193, 3
  %vm195 = vcmp.lt.s32.totalorder %v194, 2
  %vm196 = vcmp.eq.s32.totalorder %v194, 0
  %v197 = vxor.u32 %v191, 2147483648
  %v198 = vsel %vm196, %v190, %v197
  %vm199 = vcmp.eq.s32.totalorder %v194, 2
  %v200 = vxor.u32 %v190, 2147483648
  %v201 = vsel %vm199, %v200, %v191
  %v202 = vsel %vm195, %v198, %v201
  %v203 = vsel %vm192, nan, %v202
  %v204 = vand.u32 2147483647, %v99
  %vm205 = vcmp.le.f32.partialorder %v204, 0.7853982
  %vm206 = vcmp.lt.s32.totalorder %v99, 0
  %v207 = vand.u32 %v99, 2139095040
  %v208 = vshrl.u32 %v207, 23
  %v209 = vsub.s32 %v208, 127
  %v210 = vand.u32 2147483647, %v99
  %v211 = vand.u32 %v210, 8388607
  %v212 = vor.u32 %v211, 8388608
  %v213 = vsub.s32 0, %v212
  %v214 = vadd.s32 %v209, 1
  %vm215 = vcmp.gt.s32.totalorder %v214, 0
  %v216 = vsel %vm215, %v214, 0
  %v217 = vshrl.u32 %v216, 5
  %v218 = vand.u32 %v216, 31
  %v219 = vsub.s32 32, %v218
  %v220 = vshrl.u32 683565275, %v219
  %v221 = vshll.u32 683565275, %v218
  %v222 = vshrl.u32 2475754826, %v219
  %v223 = vor.u32 %v221, %v222
  %v224 = vshll.u32 2475754826, %v218
  %v225 = vshrl.u32 2131351028, %v219
  %v226 = vor.u32 %v224, %v225
  %v227 = vshll.u32 2131351028, %v218
  %v228 = vshrl.u32 2102212464, %v219
  %v229 = vor.u32 %v227, %v228
  %v230 = vshll.u32 2102212464, %v218
  %v231 = vshrl.u32 920167782, %v219
  %v232 = vor.u32 %v230, %v231
  %v233 = vshll.u32 920167782, %v218
  %v234 = vshrl.u32 1326507024, %v219
  %v235 = vor.u32 %v233, %v234
  %vm236 = vcmp.lt.s32.totalorder %v217, 1
  %vm237 = vcmp.lt.s32.totalorder %v217, 2
  %vm238 = vcmp.lt.s32.totalorder %v217, 3
  %vm239 = vcmp.lt.s32.totalorder %v217, 4
  %v240 = vsel %vm236, %v220, %v223
  %v241 = vsel %vm239, %v229, 2102212464
  %v242 = vsel %vm238, %v226, %v241
  %v243 = vsel %vm237, %v240, %v242
  %v244 = vsel %vm236, %v223, %v226
  %v245 = vsel %vm239, %v232, 920167782
  %v246 = vsel %vm238, %v229, %v245
  %v247 = vsel %vm237, %v244, %v246
  %v248 = vsel %vm236, %v226, %v229
  %v249 = vsel %vm239, %v235, 1326507024
  %v250 = vsel %vm238, %v232, %v249
  %v251 = vsel %vm237, %v248, %v250
  %v252 = vshll.u32 %v212, 8
  %v253 = vmul.u32.u64.compose %v252, %v251
  %v254 = vextract.low.u32 %v253
  %v255 = vextract.high.u32 %v253
  %v256 = vmul.u32.u64.compose %v252, %v247
  %v257 = vextract.low.u32 %v256
  %v258 = vextract.high.u32 %v256
  %v259 = vmul.u32 %v252, %v243
  %v260 = vadd.s32 %v255, %v257
  %vm261 = vc.u32 %v255, %v257
  %v262 = vadd.s32 %v258, 1
  %v263 = vsel %vm261, %v262, %v258
  %v264 = vadd.s32 %v259, %v263
  %v265 = vadd.s32 %v264, 536870912
  %v266 = vshrl.u32 %v265, 30
  %v267 = vshll.u32 %v266, 30
  %v268 = vsub.s32 %v264, %v267
  %vm269 = vcmp.lt.s32.totalorder %v268, 0
  %v270 = vsub.s32 0, %v268
  %v271 = vsel %vm269, %v270, %v268
  %v272 = vclz %v271
  %v273 = vsub.s32 %v272, 2
  %vm274 = vcmp.gt.s32.totalorder 0, %v273
  %v275 = vsel %vm274, 0, %v273
  %v276 = vsub.s32 32, %v275
  %v277 = vshll.u32 %v268, %v275
  %v278 = vshrl.u32 %v260, %v276
  %v279 = vor.u32 %v277, %v278
  %v280 = vsub.s32 4294967266, %v275
  %v281 = vadd.s32 %v280, 127
  %v282 = vshll.u32 %v281, 23
  %v283 = vor.u32 4788187, %v282
  %v284 = vand.u32 2147483647, %v283
  %v286 = vcvt.s32.f32 %v279
  %v287 = vmul.f32 %v286, %v284
  %v288 = vxor.u32 %v287, 2147483648
  %v289 = vsel %vm206, %v288, %v287
  %v290 = vsub.s32 4, %v266
  %v291 = vsel %vm206, %v290, %v266
  %v292 = vsel %vm205, %v99, %v289
  %v293 = vsel %vm205, 0, %v291
  %v294 = vcosq.f32.pop %v292
  %v295 = vsinq.f32.pop %v292
  %vm296 = vweird.f32 %v99
  %v297 = vand.u32 %v293, 3
  %vm298 = vcmp.lt.s32.totalorder %v297, 2
  %vm299 = vcmp.eq.s32.totalorder %v297, 0
  %v300 = vxor.u32 %v295, 2147483648
  %v301 = vsel %vm299, %v294, %v300
  %vm302 = vcmp.eq.s32.totalorder %v297, 2
  %v303 = vxor.u32 %v294, 2147483648
  %v304 = vsel %vm302, %v303, %v295
  %v305 = vsel %vm298, %v301, %v304
  %v306 = vsel %vm296, nan, %v305
  %v307 = vlaneseq
  %v308 = vand.u32 %v307, 127
  %vm309 = vcmp.lt.s32.totalorder %v308, 0
  %v310 = vsub.s32 0, %v308
  %v311 = vsel %vm309, %v310, %v308
  %v312 = vshrl.u32 %v311, 5
  %v313 = vand.u32 %v311, 31
  %v314 = vsub.s32 0, %v313
  %v315 = vsel %vm309, %v314, %v313
  %vm316 = vcmp.ne.s32.totalorder %v315, 0
  %vm317 = vcmp.lt.s32.totalorder %v315, 0
  %vm318 = vmand %vm317, %vm316
  %v319 = vadd.s32 %v315, 32
  %v320 = vsel %vm318, %v319, %v315
  %vm321 = vcmp.lt.s32.totalorder %v320, 16
  %v322 = vsel %vm321, %v203, %v306
  %323 = vst [vmem:[%s2] sm:$0xf] %v322
  // Predicated region
  $region10: #{sinusoidal_positional_encoding.1} parent=0 // pred_check
    _
  $region11: #{sinusoidal_positional_encoding.1} parent=0 // pred_check_branch
    %325 = sbr.rel (0) target = $region13
  $region12: #{sinusoidal_positional_encoding.1} parent=0 // pred_region
    _
  $region13: #{sinusoidal_positional_encoding.1} parent=0 // pred_fallthru
    _
  // Predicated region
  $region14: #{sinusoidal_positional_encoding.1} parent=0 // pred_check
    _
  $region15: #{sinusoidal_positional_encoding.1} parent=0 // pred_check_branch
    %327 = sbr.rel (0) target = $region17
  $region16: #{sinusoidal_positional_encoding.1} parent=0 // pred_region
    _
  $region17: #{sinusoidal_positional_encoding.1} parent=0 // pred_fallthru
    _

</llo_original>
